<compile_context>
chip_gen: v6e
topology: v6e:2x2x1
jax: 0.10.0
libtpu: 0.0.40
codegen_flags: <defaults>
</compile_context>

<pallas_src>
import functools
import math

import jax
import jax.numpy as jnp
from jax.experimental import pallas as pl
from jax.experimental.pallas import tpu as pltpu


def _round_up(x, m):
    return ((x + m - 1) // m) * m


def _individual_conv1d_kernel(w_ref, b_ref, x_ref, o_ref, *, out_ch, length, fold):
    # w_ref, b_ref: (O,) float32 in SMEM (scalar-prefetched).
    # x_ref:        (R, fold*L)     lane-dense VMEM tile of the row-folded input.
    # o_ref:        (R, fold*O*L)   lane-dense VMEM tile of the row-folded output slab.
    #
    #   o_ref[r, (j*O + o)*L + l] = w[o] * x_ref[r, j*L + l] + b[o]
    #
    # TODO(synk): if O*fold ever grows large, replace this static unroll with
    # precomputed lane-dense (1, fold*O*L) weight/bias rows in VMEM and a single
    # fused multiply-add + one full-width store.
    for j in range(fold):
        xj = x_ref[:, j * length:(j + 1) * length]          # (R, L) sub-slice
        for o in range(out_ch):
            c0 = (j * out_ch + o) * length
            o_ref[:, c0:c0 + length] = (w_ref[o] * xj + b_ref[o]).astype(o_ref.dtype)


def _vmem_capacity_bytes():
    # v5e/v6e: 128 MiB; v7x: 64 MiB per TensorCore. Conservative fallback.
    try:
        return int(pltpu.get_tpu_info().vmem_capacity_bytes)
    except Exception:
        return 64 * 1024 * 1024


def individual_conv1d(x, weight, bias):
    """x: (B, T, L); weight: (O, 1, 1) torch Conv1d layout; bias: (O,).  Returns (B, T, O, L)."""
    B, T, L = x.shape
    O, c_in, k = weight.shape
    assert c_in == 1 and k == 1, "forward semantics force in_channels=1, kernel_size=1"
    N = B * T
    itemsize = jnp.dtype(x.dtype).itemsize

    # Fold g rows so both input (g*L) and output (g*O*L) row widths are
    # multiples of 128 lanes -> fully lane-dense blocks.
    g = math.lcm(L, 128) // L
    n_pad = _round_up(N, g)                 # pad only to the small fold factor
    M = n_pad // g                          # folded row count
    w_in = g * L
    w_out = g * O * L

    # --- Tile sizing, derived per generation from physical VMEM. -------------
    vmem_cap = _vmem_capacity_bytes()
    vmem_limit = int(0.70 * vmem_cap)       # ~90 MiB on v5e/v6e, ~45 MiB on v7x
    tile_budget = vmem_limit // 2           # budget for all double-buffered tiles
    in_row_bytes = _round_up(w_in, 128) * itemsize      # lane-padded (== dense here)
    out_row_bytes = _round_up(w_out, 128) * itemsize
    out_tile_cap = 8 * 1024 * 1024          # ~8 MiB output tile ≈ HBM roofline
    rows_budget = min(tile_budget // (2 * (in_row_bytes + out_row_bytes)),
                      out_tile_cap // out_row_bytes)
    rows_budget = max(8, (rows_budget // 8) * 8)
    # Keep >= ~8 grid steps (when there is enough work) so DMAs pipeline and the
    # "parallel" row axis has work for both v7x TensorCores.
    rows_for_steps = max(8, _round_up(pl.cdiv(M, 8), 8))
    R = min(rows_budget, rows_for_steps)
    if R >= M:
        R = M                               # tiny problem: one full block
    grid = (pl.cdiv(M, R),)                 # ragged last block is masked by Pallas

    x2 = x.reshape(N, L)
    if n_pad != N:                          # < g extra rows; skipped when unneeded
        x2 = jnp.pad(x2, ((0, n_pad - N), (0, 0)))
    x3 = x2.reshape(M, w_in)                # free row-major reshape
    w1 = weight.reshape(O).astype(jnp.float32)
    b1 = bias.reshape(O).astype(jnp.float32)

    kernel = functools.partial(_individual_conv1d_kernel, out_ch=O, length=L, fold=g)

    out = pl.pallas_call(
        kernel,
        out_shape=jax.ShapeDtypeStruct((M, w_out), x.dtype),
        grid_spec=pltpu.PrefetchScalarGridSpec(
            num_scalar_prefetch=2,          # weight, bias -> SMEM
            grid=grid,
            in_specs=[pl.BlockSpec((R, w_in), lambda i, w, b: (i, 0))],
            # If an xprof trace shows the writeback DMA still exposed with >=4
            # grid steps, sweep pipeline_mode=pl.Buffered(3) here (mind v7x VMEM).
            out_specs=pl.BlockSpec((R, w_out), lambda i, w, b: (i, 0)),
        ),
        compiler_params=pltpu.CompilerParams(
            dimension_semantics=("parallel",),   # shards rows across v7x's 2 TCs
            vmem_limit_bytes=vmem_limit,
        ),
        cost_estimate=pl.CostEstimate(
            flops=2 * n_pad * O * L,
            transcendentals=0,
            bytes_accessed=(1 + O) * n_pad * L * itemsize,
        ),
    )(w1, b1, x3)

    # Free layout plumbing: (M, g*O*L) row-major == (n_pad, O, L) row-major.
    out = out.reshape(n_pad, O, L)
    if n_pad != N:                          # no-op (no copy) when N % g == 0
        out = out[:N]
    return out.reshape(B, T, O, L)


if __name__ == "__main__":
    # Small shapes consistent with the module: batch=2, depth=3, seq len=16,
    # in_channels=1 (forced by .unsqueeze(1) in forward), out_channels=4.
    B, depth, L = 2, 3, 16
    in_channels, out_channels = 1, 4

    key = jax.random.PRNGKey(0)
    kx, kw, kb = jax.random.split(key, 3)
    x = jax.random.normal(kx, (B, depth, L), dtype=jnp.float32)
    weight = jax.random.normal(kw, (out_channels, in_channels, 1), dtype=jnp.float32)
    bias = jax.random.normal(kb, (out_channels,), dtype=jnp.float32)

    out = individual_conv1d(x, weight, bias)
    out = jax.block_until_ready(out)

    # Plain-JAX reference of the same math (conv1d, k=1, C_in=1, per depth slice).
    ref = (weight.reshape(1, 1, out_channels, 1) * x[:, :, None, :]
           + bias.reshape(1, 1, out_channels, 1))
    assert out.shape == (B, depth, out_channels, L)
    assert jnp.allclose(out, ref, atol=1e-5, rtol=1e-5)

    print("KERNEL_OK")
</pallas_src>

<mosaic_0001>
module attributes {stable_mosaic.version = 11 : i64} {
  func.func @_individual_conv1d_kernel(%arg0: i32, %arg1: memref<4xf32, #tpu.memory_space<smem>>, %arg2: memref<4xf32, #tpu.memory_space<smem>>, %arg3: memref<1x128xf32, #tpu.memory_space<vmem>>, %arg4: memref<1x512xf32, #tpu.memory_space<vmem>>) attributes {dimension_semantics = [#tpu.dimension_semantics<parallel>], iteration_bounds = array<i64: 1>, scalar_prefetch = 2 : i64, scratch_operands = 0 : i64, tpu.core_type = #tpu.core_type<tc>, window_params = [{transform_indices = @transform_0, window_bounds = array<i64: 1, 128>}, {transform_indices = @transform_1, window_bounds = array<i64: 1, 512>}]} {
    %c0 = arith.constant 0 : index
    %c0_0 = arith.constant 0 : index
    %0 = vector.load %arg3[%c0, %c0_0] : memref<1x128xf32, #tpu.memory_space<vmem>>, vector<1x16xf32>
    %c0_1 = arith.constant 0 : index
    %1 = memref.load %arg1[%c0_1] : memref<4xf32, #tpu.memory_space<smem>>
    %2 = vector.broadcast %1 : f32 to vector<1x16xf32>
    %3 = arith.mulf %2, %0 : vector<1x16xf32>
    %c0_2 = arith.constant 0 : index
    %4 = memref.load %arg2[%c0_2] : memref<4xf32, #tpu.memory_space<smem>>
    %5 = vector.broadcast %4 : f32 to vector<1x16xf32>
    %6 = arith.addf %3, %5 : vector<1x16xf32>
    %c0_3 = arith.constant 0 : index
    %c0_4 = arith.constant 0 : index
    %7 = vector.load %arg4[%c0_3, %c0_4] : memref<1x512xf32, #tpu.memory_space<vmem>>, vector<1x16xf32>
    tpu.vector_store %arg4[%c0_3, %c0_4], %6 {strides = array<i32>} : memref<1x512xf32, #tpu.memory_space<vmem>>, vector<1x16xf32>,
    %c1 = arith.constant 1 : index
    %8 = memref.load %arg1[%c1] : memref<4xf32, #tpu.memory_space<smem>>
    %9 = vector.broadcast %8 : f32 to vector<1x16xf32>
    %10 = arith.mulf %9, %0 : vector<1x16xf32>
    %c1_5 = arith.constant 1 : index
    %11 = memref.load %arg2[%c1_5] : memref<4xf32, #tpu.memory_space<smem>>
    %12 = vector.broadcast %11 : f32 to vector<1x16xf32>
    %13 = arith.addf %10, %12 : vector<1x16xf32>
    %c0_6 = arith.constant 0 : index
    %c16 = arith.constant 16 : index
    %14 = vector.load %arg4[%c0_6, %c16] : memref<1x512xf32, #tpu.memory_space<vmem>>, vector<1x16xf32>
    tpu.vector_store %arg4[%c0_6, %c16], %13 {strides = array<i32>} : memref<1x512xf32, #tpu.memory_space<vmem>>, vector<1x16xf32>,
    %c2 = arith.constant 2 : index
    %15 = memref.load %arg1[%c2] : memref<4xf32, #tpu.memory_space<smem>>
    %16 = vector.broadcast %15 : f32 to vector<1x16xf32>
    %17 = arith.mulf %16, %0 : vector<1x16xf32>
    %c2_7 = arith.constant 2 : index
    %18 = memref.load %arg2[%c2_7] : memref<4xf32, #tpu.memory_space<smem>>
    %19 = vector.broadcast %18 : f32 to vector<1x16xf32>
    %20 = arith.addf %17, %19 : vector<1x16xf32>
    %c0_8 = arith.constant 0 : index
    %c32 = arith.constant 32 : index
    %21 = vector.load %arg4[%c0_8, %c32] : memref<1x512xf32, #tpu.memory_space<vmem>>, vector<1x16xf32>
    tpu.vector_store %arg4[%c0_8, %c32], %20 {strides = array<i32>} : memref<1x512xf32, #tpu.memory_space<vmem>>, vector<1x16xf32>,
    %c3 = arith.constant 3 : index
    %22 = memref.load %arg1[%c3] : memref<4xf32, #tpu.memory_space<smem>>
    %23 = vector.broadcast %22 : f32 to vector<1x16xf32>
    %24 = arith.mulf %23, %0 : vector<1x16xf32>
    %c3_9 = arith.constant 3 : index
    %25 = memref.load %arg2[%c3_9] : memref<4xf32, #tpu.memory_space<smem>>
    %26 = vector.broadcast %25 : f32 to vector<1x16xf32>
    %27 = arith.addf %24, %26 : vector<1x16xf32>
    %c0_10 = arith.constant 0 : index
    %c48 = arith.constant 48 : index
    %28 = vector.load %arg4[%c0_10, %c48] : memref<1x512xf32, #tpu.memory_space<vmem>>, vector<1x16xf32>
    tpu.vector_store %arg4[%c0_10, %c48], %27 {strides = array<i32>} : memref<1x512xf32, #tpu.memory_space<vmem>>, vector<1x16xf32>,
    %c0_11 = arith.constant 0 : index
    %c16_12 = arith.constant 16 : index
    %29 = vector.load %arg3[%c0_11, %c16_12] : memref<1x128xf32, #tpu.memory_space<vmem>>, vector<1x16xf32>
    %c0_13 = arith.constant 0 : index
    %30 = memref.load %arg1[%c0_13] : memref<4xf32, #tpu.memory_space<smem>>
    %31 = vector.broadcast %30 : f32 to vector<1x16xf32>
    %32 = arith.mulf %31, %29 : vector<1x16xf32>
    %c0_14 = arith.constant 0 : index
    %33 = memref.load %arg2[%c0_14] : memref<4xf32, #tpu.memory_space<smem>>
    %34 = vector.broadcast %33 : f32 to vector<1x16xf32>
    %35 = arith.addf %32, %34 : vector<1x16xf32>
    %c0_15 = arith.constant 0 : index
    %c64 = arith.constant 64 : index
    %36 = vector.load %arg4[%c0_15, %c64] : memref<1x512xf32, #tpu.memory_space<vmem>>, vector<1x16xf32>
    tpu.vector_store %arg4[%c0_15, %c64], %35 {strides = array<i32>} : memref<1x512xf32, #tpu.memory_space<vmem>>, vector<1x16xf32>,
    %c1_16 = arith.constant 1 : index
    %37 = memref.load %arg1[%c1_16] : memref<4xf32, #tpu.memory_space<smem>>
    %38 = vector.broadcast %37 : f32 to vector<1x16xf32>
    %39 = arith.mulf %38, %29 : vector<1x16xf32>
    %c1_17 = arith.constant 1 : index
    %40 = memref.load %arg2[%c1_17] : memref<4xf32, #tpu.memory_space<smem>>
    %41 = vector.broadcast %40 : f32 to vector<1x16xf32>
    %42 = arith.addf %39, %41 : vector<1x16xf32>
    %c0_18 = arith.constant 0 : index
    %c80 = arith.constant 80 : index
    %43 = vector.load %arg4[%c0_18, %c80] : memref<1x512xf32, #tpu.memory_space<vmem>>, vector<1x16xf32>
    tpu.vector_store %arg4[%c0_18, %c80], %42 {strides = array<i32>} : memref<1x512xf32, #tpu.memory_space<vmem>>, vector<1x16xf32>,
    %c2_19 = arith.constant 2 : index
    %44 = memref.load %arg1[%c2_19] : memref<4xf32, #tpu.memory_space<smem>>
    %45 = vector.broadcast %44 : f32 to vector<1x16xf32>
    %46 = arith.mulf %45, %29 : vector<1x16xf32>
    %c2_20 = arith.constant 2 : index
    %47 = memref.load %arg2[%c2_20] : memref<4xf32, #tpu.memory_space<smem>>
    %48 = vector.broadcast %47 : f32 to vector<1x16xf32>
    %49 = arith.addf %46, %48 : vector<1x16xf32>
    %c0_21 = arith.constant 0 : index
    %c96 = arith.constant 96 : index
    %50 = vector.load %arg4[%c0_21, %c96] : memref<1x512xf32, #tpu.memory_space<vmem>>, vector<1x16xf32>
    tpu.vector_store %arg4[%c0_21, %c96], %49 {strides = array<i32>} : memref<1x512xf32, #tpu.memory_space<vmem>>, vector<1x16xf32>,
    %c3_22 = arith.constant 3 : index
    %51 = memref.load %arg1[%c3_22] : memref<4xf32, #tpu.memory_space<smem>>
    %52 = vector.broadcast %51 : f32 to vector<1x16xf32>
    %53 = arith.mulf %52, %29 : vector<1x16xf32>
    %c3_23 = arith.constant 3 : index
    %54 = memref.load %arg2[%c3_23] : memref<4xf32, #tpu.memory_space<smem>>
    %55 = vector.broadcast %54 : f32 to vector<1x16xf32>
    %56 = arith.addf %53, %55 : vector<1x16xf32>
    %c0_24 = arith.constant 0 : index
    %c112 = arith.constant 112 : index
    %57 = vector.load %arg4[%c0_24, %c112] : memref<1x512xf32, #tpu.memory_space<vmem>>, vector<1x16xf32>
    tpu.vector_store %arg4[%c0_24, %c112], %56 {strides = array<i32>} : memref<1x512xf32, #tpu.memory_space<vmem>>, vector<1x16xf32>,
    %c0_25 = arith.constant 0 : index
    %c32_26 = arith.constant 32 : index
    %58 = vector.load %arg3[%c0_25, %c32_26] : memref<1x128xf32, #tpu.memory_space<vmem>>, vector<1x16xf32>
    %c0_27 = arith.constant 0 : index
    %59 = memref.load %arg1[%c0_27] : memref<4xf32, #tpu.memory_space<smem>>
    %60 = vector.broadcast %59 : f32 to vector<1x16xf32>
    %61 = arith.mulf %60, %58 : vector<1x16xf32>
    %c0_28 = arith.constant 0 : index
    %62 = memref.load %arg2[%c0_28] : memref<4xf32, #tpu.memory_space<smem>>
    %63 = vector.broadcast %62 : f32 to vector<1x16xf32>
    %64 = arith.addf %61, %63 : vector<1x16xf32>
    %c0_29 = arith.constant 0 : index
    %c128 = arith.constant 128 : index
    %65 = vector.load %arg4[%c0_29, %c128] : memref<1x512xf32, #tpu.memory_space<vmem>>, vector<1x16xf32>
    tpu.vector_store %arg4[%c0_29, %c128], %64 {strides = array<i32>} : memref<1x512xf32, #tpu.memory_space<vmem>>, vector<1x16xf32>,
    %c1_30 = arith.constant 1 : index
    %66 = memref.load %arg1[%c1_30] : memref<4xf32, #tpu.memory_space<smem>>
    %67 = vector.broadcast %66 : f32 to vector<1x16xf32>
    %68 = arith.mulf %67, %58 : vector<1x16xf32>
    %c1_31 = arith.constant 1 : index
    %69 = memref.load %arg2[%c1_31] : memref<4xf32, #tpu.memory_space<smem>>
    %70 = vector.broadcast %69 : f32 to vector<1x16xf32>
    %71 = arith.addf %68, %70 : vector<1x16xf32>
    %c0_32 = arith.constant 0 : index
    %c144 = arith.constant 144 : index
    %72 = vector.load %arg4[%c0_32, %c144] : memref<1x512xf32, #tpu.memory_space<vmem>>, vector<1x16xf32>
    tpu.vector_store %arg4[%c0_32, %c144], %71 {strides = array<i32>} : memref<1x512xf32, #tpu.memory_space<vmem>>, vector<1x16xf32>,
    %c2_33 = arith.constant 2 : index
    %73 = memref.load %arg1[%c2_33] : memref<4xf32, #tpu.memory_space<smem>>
    %74 = vector.broadcast %73 : f32 to vector<1x16xf32>
    %75 = arith.mulf %74, %58 : vector<1x16xf32>
    %c2_34 = arith.constant 2 : index
    %76 = memref.load %arg2[%c2_34] : memref<4xf32, #tpu.memory_space<smem>>
    %77 = vector.broadcast %76 : f32 to vector<1x16xf32>
    %78 = arith.addf %75, %77 : vector<1x16xf32>
    %c0_35 = arith.constant 0 : index
    %c160 = arith.constant 160 : index
    %79 = vector.load %arg4[%c0_35, %c160] : memref<1x512xf32, #tpu.memory_space<vmem>>, vector<1x16xf32>
    tpu.vector_store %arg4[%c0_35, %c160], %78 {strides = array<i32>} : memref<1x512xf32, #tpu.memory_space<vmem>>, vector<1x16xf32>,
    %c3_36 = arith.constant 3 : index
    %80 = memref.load %arg1[%c3_36] : memref<4xf32, #tpu.memory_space<smem>>
    %81 = vector.broadcast %80 : f32 to vector<1x16xf32>
    %82 = arith.mulf %81, %58 : vector<1x16xf32>
    %c3_37 = arith.constant 3 : index
    %83 = memref.load %arg2[%c3_37] : memref<4xf32, #tpu.memory_space<smem>>
    %84 = vector.broadcast %83 : f32 to vector<1x16xf32>
    %85 = arith.addf %82, %84 : vector<1x16xf32>
    %c0_38 = arith.constant 0 : index
    %c176 = arith.constant 176 : index
    %86 = vector.load %arg4[%c0_38, %c176] : memref<1x512xf32, #tpu.memory_space<vmem>>, vector<1x16xf32>
    tpu.vector_store %arg4[%c0_38, %c176], %85 {strides = array<i32>} : memref<1x512xf32, #tpu.memory_space<vmem>>, vector<1x16xf32>,
    %c0_39 = arith.constant 0 : index
    %c48_40 = arith.constant 48 : index
    %87 = vector.load %arg3[%c0_39, %c48_40] : memref<1x128xf32, #tpu.memory_space<vmem>>, vector<1x16xf32>
    %c0_41 = arith.constant 0 : index
    %88 = memref.load %arg1[%c0_41] : memref<4xf32, #tpu.memory_space<smem>>
    %89 = vector.broadcast %88 : f32 to vector<1x16xf32>
    %90 = arith.mulf %89, %87 : vector<1x16xf32>
    %c0_42 = arith.constant 0 : index
    %91 = memref.load %arg2[%c0_42] : memref<4xf32, #tpu.memory_space<smem>>
    %92 = vector.broadcast %91 : f32 to vector<1x16xf32>
    %93 = arith.addf %90, %92 : vector<1x16xf32>
    %c0_43 = arith.constant 0 : index
    %c192 = arith.constant 192 : index
    %94 = vector.load %arg4[%c0_43, %c192] : memref<1x512xf32, #tpu.memory_space<vmem>>, vector<1x16xf32>
    tpu.vector_store %arg4[%c0_43, %c192], %93 {strides = array<i32>} : memref<1x512xf32, #tpu.memory_space<vmem>>, vector<1x16xf32>,
    %c1_44 = arith.constant 1 : index
    %95 = memref.load %arg1[%c1_44] : memref<4xf32, #tpu.memory_space<smem>>
    %96 = vector.broadcast %95 : f32 to vector<1x16xf32>
    %97 = arith.mulf %96, %87 : vector<1x16xf32>
    %c1_45 = arith.constant 1 : index
    %98 = memref.load %arg2[%c1_45] : memref<4xf32, #tpu.memory_space<smem>>
    %99 = vector.broadcast %98 : f32 to vector<1x16xf32>
    %100 = arith.addf %97, %99 : vector<1x16xf32>
    %c0_46 = arith.constant 0 : index
    %c208 = arith.constant 208 : index
    %101 = vector.load %arg4[%c0_46, %c208] : memref<1x512xf32, #tpu.memory_space<vmem>>, vector<1x16xf32>
    tpu.vector_store %arg4[%c0_46, %c208], %100 {strides = array<i32>} : memref<1x512xf32, #tpu.memory_space<vmem>>, vector<1x16xf32>,
    %c2_47 = arith.constant 2 : index
    %102 = memref.load %arg1[%c2_47] : memref<4xf32, #tpu.memory_space<smem>>
    %103 = vector.broadcast %102 : f32 to vector<1x16xf32>
    %104 = arith.mulf %103, %87 : vector<1x16xf32>
    %c2_48 = arith.constant 2 : index
    %105 = memref.load %arg2[%c2_48] : memref<4xf32, #tpu.memory_space<smem>>
    %106 = vector.broadcast %105 : f32 to vector<1x16xf32>
    %107 = arith.addf %104, %106 : vector<1x16xf32>
    %c0_49 = arith.constant 0 : index
    %c224 = arith.constant 224 : index
    %108 = vector.load %arg4[%c0_49, %c224] : memref<1x512xf32, #tpu.memory_space<vmem>>, vector<1x16xf32>
    tpu.vector_store %arg4[%c0_49, %c224], %107 {strides = array<i32>} : memref<1x512xf32, #tpu.memory_space<vmem>>, vector<1x16xf32>,
    %c3_50 = arith.constant 3 : index
    %109 = memref.load %arg1[%c3_50] : memref<4xf32, #tpu.memory_space<smem>>
    %110 = vector.broadcast %109 : f32 to vector<1x16xf32>
    %111 = arith.mulf %110, %87 : vector<1x16xf32>
    %c3_51 = arith.constant 3 : index
    %112 = memref.load %arg2[%c3_51] : memref<4xf32, #tpu.memory_space<smem>>
    %113 = vector.broadcast %112 : f32 to vector<1x16xf32>
    %114 = arith.addf %111, %113 : vector<1x16xf32>
    %c0_52 = arith.constant 0 : index
    %c240 = arith.constant 240 : index
    %115 = vector.load %arg4[%c0_52, %c240] : memref<1x512xf32, #tpu.memory_space<vmem>>, vector<1x16xf32>
    tpu.vector_store %arg4[%c0_52, %c240], %114 {strides = array<i32>} : memref<1x512xf32, #tpu.memory_space<vmem>>, vector<1x16xf32>,
    %c0_53 = arith.constant 0 : index
    %c64_54 = arith.constant 64 : index
    %116 = vector.load %arg3[%c0_53, %c64_54] : memref<1x128xf32, #tpu.memory_space<vmem>>, vector<1x16xf32>
    %c0_55 = arith.constant 0 : index
    %117 = memref.load %arg1[%c0_55] : memref<4xf32, #tpu.memory_space<smem>>
    %118 = vector.broadcast %117 : f32 to vector<1x16xf32>
    %119 = arith.mulf %118, %116 : vector<1x16xf32>
    %c0_56 = arith.constant 0 : index
    %120 = memref.load %arg2[%c0_56] : memref<4xf32, #tpu.memory_space<smem>>
    %121 = vector.broadcast %120 : f32 to vector<1x16xf32>
    %122 = arith.addf %119, %121 : vector<1x16xf32>
    %c0_57 = arith.constant 0 : index
    %c256 = arith.constant 256 : index
    %123 = vector.load %arg4[%c0_57, %c256] : memref<1x512xf32, #tpu.memory_space<vmem>>, vector<1x16xf32>
    tpu.vector_store %arg4[%c0_57, %c256], %122 {strides = array<i32>} : memref<1x512xf32, #tpu.memory_space<vmem>>, vector<1x16xf32>,
    %c1_58 = arith.constant 1 : index
    %124 = memref.load %arg1[%c1_58] : memref<4xf32, #tpu.memory_space<smem>>
    %125 = vector.broadcast %124 : f32 to vector<1x16xf32>
    %126 = arith.mulf %125, %116 : vector<1x16xf32>
    %c1_59 = arith.constant 1 : index
    %127 = memref.load %arg2[%c1_59] : memref<4xf32, #tpu.memory_space<smem>>
    %128 = vector.broadcast %127 : f32 to vector<1x16xf32>
    %129 = arith.addf %126, %128 : vector<1x16xf32>
    %c0_60 = arith.constant 0 : index
    %c272 = arith.constant 272 : index
    %130 = vector.load %arg4[%c0_60, %c272] : memref<1x512xf32, #tpu.memory_space<vmem>>, vector<1x16xf32>
    tpu.vector_store %arg4[%c0_60, %c272], %129 {strides = array<i32>} : memref<1x512xf32, #tpu.memory_space<vmem>>, vector<1x16xf32>,
    %c2_61 = arith.constant 2 : index
    %131 = memref.load %arg1[%c2_61] : memref<4xf32, #tpu.memory_space<smem>>
    %132 = vector.broadcast %131 : f32 to vector<1x16xf32>
    %133 = arith.mulf %132, %116 : vector<1x16xf32>
    %c2_62 = arith.constant 2 : index
    %134 = memref.load %arg2[%c2_62] : memref<4xf32, #tpu.memory_space<smem>>
    %135 = vector.broadcast %134 : f32 to vector<1x16xf32>
    %136 = arith.addf %133, %135 : vector<1x16xf32>
    %c0_63 = arith.constant 0 : index
    %c288 = arith.constant 288 : index
    %137 = vector.load %arg4[%c0_63, %c288] : memref<1x512xf32, #tpu.memory_space<vmem>>, vector<1x16xf32>
    tpu.vector_store %arg4[%c0_63, %c288], %136 {strides = array<i32>} : memref<1x512xf32, #tpu.memory_space<vmem>>, vector<1x16xf32>,
    %c3_64 = arith.constant 3 : index
    %138 = memref.load %arg1[%c3_64] : memref<4xf32, #tpu.memory_space<smem>>
    %139 = vector.broadcast %138 : f32 to vector<1x16xf32>
    %140 = arith.mulf %139, %116 : vector<1x16xf32>
    %c3_65 = arith.constant 3 : index
    %141 = memref.load %arg2[%c3_65] : memref<4xf32, #tpu.memory_space<smem>>
    %142 = vector.broadcast %141 : f32 to vector<1x16xf32>
    %143 = arith.addf %140, %142 : vector<1x16xf32>
    %c0_66 = arith.constant 0 : index
    %c304 = arith.constant 304 : index
    %144 = vector.load %arg4[%c0_66, %c304] : memref<1x512xf32, #tpu.memory_space<vmem>>, vector<1x16xf32>
    tpu.vector_store %arg4[%c0_66, %c304], %143 {strides = array<i32>} : memref<1x512xf32, #tpu.memory_space<vmem>>, vector<1x16xf32>,
    %c0_67 = arith.constant 0 : index
    %c80_68 = arith.constant 80 : index
    %145 = vector.load %arg3[%c0_67, %c80_68] : memref<1x128xf32, #tpu.memory_space<vmem>>, vector<1x16xf32>
    %c0_69 = arith.constant 0 : index
    %146 = memref.load %arg1[%c0_69] : memref<4xf32, #tpu.memory_space<smem>>
    %147 = vector.broadcast %146 : f32 to vector<1x16xf32>
    %148 = arith.mulf %147, %145 : vector<1x16xf32>
    %c0_70 = arith.constant 0 : index
    %149 = memref.load %arg2[%c0_70] : memref<4xf32, #tpu.memory_space<smem>>
    %150 = vector.broadcast %149 : f32 to vector<1x16xf32>
    %151 = arith.addf %148, %150 : vector<1x16xf32>
    %c0_71 = arith.constant 0 : index
    %c320 = arith.constant 320 : index
    %152 = vector.load %arg4[%c0_71, %c320] : memref<1x512xf32, #tpu.memory_space<vmem>>, vector<1x16xf32>
    tpu.vector_store %arg4[%c0_71, %c320], %151 {strides = array<i32>} : memref<1x512xf32, #tpu.memory_space<vmem>>, vector<1x16xf32>,
    %c1_72 = arith.constant 1 : index
    %153 = memref.load %arg1[%c1_72] : memref<4xf32, #tpu.memory_space<smem>>
    %154 = vector.broadcast %153 : f32 to vector<1x16xf32>
    %155 = arith.mulf %154, %145 : vector<1x16xf32>
    %c1_73 = arith.constant 1 : index
    %156 = memref.load %arg2[%c1_73] : memref<4xf32, #tpu.memory_space<smem>>
    %157 = vector.broadcast %156 : f32 to vector<1x16xf32>
    %158 = arith.addf %155, %157 : vector<1x16xf32>
    %c0_74 = arith.constant 0 : index
    %c336 = arith.constant 336 : index
    %159 = vector.load %arg4[%c0_74, %c336] : memref<1x512xf32, #tpu.memory_space<vmem>>, vector<1x16xf32>
    tpu.vector_store %arg4[%c0_74, %c336], %158 {strides = array<i32>} : memref<1x512xf32, #tpu.memory_space<vmem>>, vector<1x16xf32>,
    %c2_75 = arith.constant 2 : index
    %160 = memref.load %arg1[%c2_75] : memref<4xf32, #tpu.memory_space<smem>>
    %161 = vector.broadcast %160 : f32 to vector<1x16xf32>
    %162 = arith.mulf %161, %145 : vector<1x16xf32>
    %c2_76 = arith.constant 2 : index
    %163 = memref.load %arg2[%c2_76] : memref<4xf32, #tpu.memory_space<smem>>
    %164 = vector.broadcast %163 : f32 to vector<1x16xf32>
    %165 = arith.addf %162, %164 : vector<1x16xf32>
    %c0_77 = arith.constant 0 : index
    %c352 = arith.constant 352 : index
    %166 = vector.load %arg4[%c0_77, %c352] : memref<1x512xf32, #tpu.memory_space<vmem>>, vector<1x16xf32>
    tpu.vector_store %arg4[%c0_77, %c352], %165 {strides = array<i32>} : memref<1x512xf32, #tpu.memory_space<vmem>>, vector<1x16xf32>,
    %c3_78 = arith.constant 3 : index
    %167 = memref.load %arg1[%c3_78] : memref<4xf32, #tpu.memory_space<smem>>
    %168 = vector.broadcast %167 : f32 to vector<1x16xf32>
    %169 = arith.mulf %168, %145 : vector<1x16xf32>
    %c3_79 = arith.constant 3 : index
    %170 = memref.load %arg2[%c3_79] : memref<4xf32, #tpu.memory_space<smem>>
    %171 = vector.broadcast %170 : f32 to vector<1x16xf32>
    %172 = arith.addf %169, %171 : vector<1x16xf32>
    %c0_80 = arith.constant 0 : index
    %c368 = arith.constant 368 : index
    %173 = vector.load %arg4[%c0_80, %c368] : memref<1x512xf32, #tpu.memory_space<vmem>>, vector<1x16xf32>
    tpu.vector_store %arg4[%c0_80, %c368], %172 {strides = array<i32>} : memref<1x512xf32, #tpu.memory_space<vmem>>, vector<1x16xf32>,
    %c0_81 = arith.constant 0 : index
    %c96_82 = arith.constant 96 : index
    %174 = vector.load %arg3[%c0_81, %c96_82] : memref<1x128xf32, #tpu.memory_space<vmem>>, vector<1x16xf32>
    %c0_83 = arith.constant 0 : index
    %175 = memref.load %arg1[%c0_83] : memref<4xf32, #tpu.memory_space<smem>>
    %176 = vector.broadcast %175 : f32 to vector<1x16xf32>
    %177 = arith.mulf %176, %174 : vector<1x16xf32>
    %c0_84 = arith.constant 0 : index
    %178 = memref.load %arg2[%c0_84] : memref<4xf32, #tpu.memory_space<smem>>
    %179 = vector.broadcast %178 : f32 to vector<1x16xf32>
    %180 = arith.addf %177, %179 : vector<1x16xf32>
    %c0_85 = arith.constant 0 : index
    %c384 = arith.constant 384 : index
    %181 = vector.load %arg4[%c0_85, %c384] : memref<1x512xf32, #tpu.memory_space<vmem>>, vector<1x16xf32>
    tpu.vector_store %arg4[%c0_85, %c384], %180 {strides = array<i32>} : memref<1x512xf32, #tpu.memory_space<vmem>>, vector<1x16xf32>,
    %c1_86 = arith.constant 1 : index
    %182 = memref.load %arg1[%c1_86] : memref<4xf32, #tpu.memory_space<smem>>
    %183 = vector.broadcast %182 : f32 to vector<1x16xf32>
    %184 = arith.mulf %183, %174 : vector<1x16xf32>
    %c1_87 = arith.constant 1 : index
    %185 = memref.load %arg2[%c1_87] : memref<4xf32, #tpu.memory_space<smem>>
    %186 = vector.broadcast %185 : f32 to vector<1x16xf32>
    %187 = arith.addf %184, %186 : vector<1x16xf32>
    %c0_88 = arith.constant 0 : index
    %c400 = arith.constant 400 : index
    %188 = vector.load %arg4[%c0_88, %c400] : memref<1x512xf32, #tpu.memory_space<vmem>>, vector<1x16xf32>
    tpu.vector_store %arg4[%c0_88, %c400], %187 {strides = array<i32>} : memref<1x512xf32, #tpu.memory_space<vmem>>, vector<1x16xf32>,
    %c2_89 = arith.constant 2 : index
    %189 = memref.load %arg1[%c2_89] : memref<4xf32, #tpu.memory_space<smem>>
    %190 = vector.broadcast %189 : f32 to vector<1x16xf32>
    %191 = arith.mulf %190, %174 : vector<1x16xf32>
    %c2_90 = arith.constant 2 : index
    %192 = memref.load %arg2[%c2_90] : memref<4xf32, #tpu.memory_space<smem>>
    %193 = vector.broadcast %192 : f32 to vector<1x16xf32>
    %194 = arith.addf %191, %193 : vector<1x16xf32>
    %c0_91 = arith.constant 0 : index
    %c416 = arith.constant 416 : index
    %195 = vector.load %arg4[%c0_91, %c416] : memref<1x512xf32, #tpu.memory_space<vmem>>, vector<1x16xf32>
    tpu.vector_store %arg4[%c0_91, %c416], %194 {strides = array<i32>} : memref<1x512xf32, #tpu.memory_space<vmem>>, vector<1x16xf32>,
    %c3_92 = arith.constant 3 : index
    %196 = memref.load %arg1[%c3_92] : memref<4xf32, #tpu.memory_space<smem>>
    %197 = vector.broadcast %196 : f32 to vector<1x16xf32>
    %198 = arith.mulf %197, %174 : vector<1x16xf32>
    %c3_93 = arith.constant 3 : index
    %199 = memref.load %arg2[%c3_93] : memref<4xf32, #tpu.memory_space<smem>>
    %200 = vector.broadcast %199 : f32 to vector<1x16xf32>
    %201 = arith.addf %198, %200 : vector<1x16xf32>
    %c0_94 = arith.constant 0 : index
    %c432 = arith.constant 432 : index
    %202 = vector.load %arg4[%c0_94, %c432] : memref<1x512xf32, #tpu.memory_space<vmem>>, vector<1x16xf32>
    tpu.vector_store %arg4[%c0_94, %c432], %201 {strides = array<i32>} : memref<1x512xf32, #tpu.memory_space<vmem>>, vector<1x16xf32>,
    %c0_95 = arith.constant 0 : index
    %c112_96 = arith.constant 112 : index
    %203 = vector.load %arg3[%c0_95, %c112_96] : memref<1x128xf32, #tpu.memory_space<vmem>>, vector<1x16xf32>
    %c0_97 = arith.constant 0 : index
    %204 = memref.load %arg1[%c0_97] : memref<4xf32, #tpu.memory_space<smem>>
    %205 = vector.broadcast %204 : f32 to vector<1x16xf32>
    %206 = arith.mulf %205, %203 : vector<1x16xf32>
    %c0_98 = arith.constant 0 : index
    %207 = memref.load %arg2[%c0_98] : memref<4xf32, #tpu.memory_space<smem>>
    %208 = vector.broadcast %207 : f32 to vector<1x16xf32>
    %209 = arith.addf %206, %208 : vector<1x16xf32>
    %c0_99 = arith.constant 0 : index
    %c448 = arith.constant 448 : index
    %210 = vector.load %arg4[%c0_99, %c448] : memref<1x512xf32, #tpu.memory_space<vmem>>, vector<1x16xf32>
    tpu.vector_store %arg4[%c0_99, %c448], %209 {strides = array<i32>} : memref<1x512xf32, #tpu.memory_space<vmem>>, vector<1x16xf32>,
    %c1_100 = arith.constant 1 : index
    %211 = memref.load %arg1[%c1_100] : memref<4xf32, #tpu.memory_space<smem>>
    %212 = vector.broadcast %211 : f32 to vector<1x16xf32>
    %213 = arith.mulf %212, %203 : vector<1x16xf32>
    %c1_101 = arith.constant 1 : index
    %214 = memref.load %arg2[%c1_101] : memref<4xf32, #tpu.memory_space<smem>>
    %215 = vector.broadcast %214 : f32 to vector<1x16xf32>
    %216 = arith.addf %213, %215 : vector<1x16xf32>
    %c0_102 = arith.constant 0 : index
    %c464 = arith.constant 464 : index
    %217 = vector.load %arg4[%c0_102, %c464] : memref<1x512xf32, #tpu.memory_space<vmem>>, vector<1x16xf32>
    tpu.vector_store %arg4[%c0_102, %c464], %216 {strides = array<i32>} : memref<1x512xf32, #tpu.memory_space<vmem>>, vector<1x16xf32>,
    %c2_103 = arith.constant 2 : index
    %218 = memref.load %arg1[%c2_103] : memref<4xf32, #tpu.memory_space<smem>>
    %219 = vector.broadcast %218 : f32 to vector<1x16xf32>
    %220 = arith.mulf %219, %203 : vector<1x16xf32>
    %c2_104 = arith.constant 2 : index
    %221 = memref.load %arg2[%c2_104] : memref<4xf32, #tpu.memory_space<smem>>
    %222 = vector.broadcast %221 : f32 to vector<1x16xf32>
    %223 = arith.addf %220, %222 : vector<1x16xf32>
    %c0_105 = arith.constant 0 : index
    %c480 = arith.constant 480 : index
    %224 = vector.load %arg4[%c0_105, %c480] : memref<1x512xf32, #tpu.memory_space<vmem>>, vector<1x16xf32>
    tpu.vector_store %arg4[%c0_105, %c480], %223 {strides = array<i32>} : memref<1x512xf32, #tpu.memory_space<vmem>>, vector<1x16xf32>,
    %c3_106 = arith.constant 3 : index
    %225 = memref.load %arg1[%c3_106] : memref<4xf32, #tpu.memory_space<smem>>
    %226 = vector.broadcast %225 : f32 to vector<1x16xf32>
    %227 = arith.mulf %226, %203 : vector<1x16xf32>
    %c3_107 = arith.constant 3 : index
    %228 = memref.load %arg2[%c3_107] : memref<4xf32, #tpu.memory_space<smem>>
    %229 = vector.broadcast %228 : f32 to vector<1x16xf32>
    %230 = arith.addf %227, %229 : vector<1x16xf32>
    %c0_108 = arith.constant 0 : index
    %c496 = arith.constant 496 : index
    %231 = vector.load %arg4[%c0_108, %c496] : memref<1x512xf32, #tpu.memory_space<vmem>>, vector<1x16xf32>
    tpu.vector_store %arg4[%c0_108, %c496], %230 {strides = array<i32>} : memref<1x512xf32, #tpu.memory_space<vmem>>, vector<1x16xf32>,
    return
  }
  func.func @transform_0(%arg0: i32, %arg1: memref<4xf32, #tpu.memory_space<smem>>, %arg2: memref<4xf32, #tpu.memory_space<smem>>) -> (i32, i32) {
    %c0_i32 = arith.constant 0 : i32
    %c0_i32_0 = arith.constant 0 : i32
    return %arg0, %c0_i32 : i32, i32
  }
  func.func @transform_1(%arg0: i32, %arg1: memref<4xf32, #tpu.memory_space<smem>>, %arg2: memref<4xf32, #tpu.memory_space<smem>>) -> (i32, i32) {
    %c0_i32 = arith.constant 0 : i32
    %c0_i32_0 = arith.constant 0 : i32
    return %arg0, %c0_i32 : i32, i32
  }
}

</mosaic_0001>

<llo_original>
// kernel: tpu_custom_call.1
$region0: #{tpu_custom_call.1}
  #allocation0 [shape = 'u32[]', space=smem, size = 0x4, offset = 0x4, fixed_abs, tag = 'smem constant byte address 0x4 - core index']
  #allocation1 [shape = 'u32[144,128]{1,0:T(1,128)}', space=vmem, size = 0x12000, scoped, tag = 'internal scratch']
  #allocation2 [shape = 's32[1]{0}', space=sflag, size = 0x4, scoped, tag = 'scoped memory for tpu_custom_call.1']
  #allocation3 [shape = 'u8[512]{0}', space=smem, size = 0x200, scoped, tag = 'prefetched SMEM operand 0']
  #allocation4 [shape = 'u8[512]{0}', space=smem, size = 0x200, scoped, tag = 'prefetched SMEM operand 1']
  %s0 = inlined_call_operand.hbm [shape: f32[4], index: 0, kind: input, shape index: {}]
  %s1 = inlined_call_operand.vmem [shape: f32[4], index: 1, kind: input, shape index: {}]
  %s2 = inlined_call_operand.vmem [shape: f32[1,128], index: 2, kind: input, shape index: {}]
  %s3 = inlined_call_operand.hbm [shape: f32[1,512], index: 3, kind: output, shape index: {}]
  %s4 = sld [smem:[#allocation0]]
  $region14: #{tpu_custom_call.1} parent=0
    _
  %s6 = ssub.s32 1, %s4
  %s7 = scalar_select 0, %s6, %s4
  %9 = dma.hbm_to_smem %s0, 16, [#allocation3], [#allocation2]
  %s10 = sshll.u32 %s1, 4
  %s11 = int_to_ptr.vmem [resolvable:$true] %s10
  %13 = dma.vmem_to_smem %s11, 16, [#allocation4], [#allocation2]
  %14 = dma.done [#allocation2], 32
  %15 = sfence
  $region1: #{tpu_custom_call.1} parent=0
    #allocation5 [shape = 'u8[2048]{0}', space=vmem, size = 0x800, scoped, tag = 'output window, operand 0, single buffered']
    #allocation6 [shape = 's32[1]{0}', space=sflag, size = 0x4, scoped, tag = 'scoped memory for tpu_custom_call.1']
    %16 = vsyncpa [#allocation6], 0
    // Predicated region
    $region2: #{tpu_custom_call.1} parent=1 // pred_check
      _
    $region3: #{tpu_custom_call.1} parent=1 // pred_check_branch
      %18 = sbr.rel (0) target = $region5
    $region4: #{tpu_custom_call.1} parent=1 // pred_region
      _
    $region5: #{tpu_custom_call.1} parent=1 // pred_fallthru
      _
    %v19 = vld [vmem:[%s2] sm:$0x1]
    %s20 = sld [smem:[#allocation3]]
    %v21 = vstv %s20
    %v22 = vmul.f32 %v21, %v19
    %s23 = sld [smem:[#allocation4]]
    %v24 = vstv %s23
    %v25 = vadd.f32 %v22, %v24
    %v26 = vlaneseq
    %vm27 = vcmp.ge.s32.totalorder %v26, 0
    %vm28 = vcmp.lt.s32.totalorder %v26, 16
    %vm29 = vmand %vm27, %vm28
    %30 = vst.msk [vmem:[#allocation5] sm:$0x1] %vm29, %v25
    %s31 = sld [smem:[#allocation3 + $0x1]]
    %v32 = vstv %s31
    %v33 = vmul.f32 %v32, %v19
    %s34 = sld [smem:[#allocation4 + $0x1]]
    %v35 = vstv %s34
    %v36 = vadd.f32 %v33, %v35
    %38 = vrot.lane.b32.xlu0 %v36, 16
    %v39 = vpop.permute.xlu0 %38
    %vm41 = vcmp.ge.s32.totalorder %v26, 16
    %vm42 = vcmp.lt.s32.totalorder %v26, 32
    %vm43 = vmand %vm41, %vm42
    %44 = vst.msk [vmem:[#allocation5] sm:$0x1] %vm43, %v39
    %s45 = sld [smem:[#allocation3 + $0x2]]
    %v46 = vstv %s45
    %v47 = vmul.f32 %v46, %v19
    %s48 = sld [smem:[#allocation4 + $0x2]]
    %v49 = vstv %s48
    %v50 = vadd.f32 %v47, %v49
    %52 = vrot.lane.b32.xlu0 %v50, 32
    %v53 = vpop.permute.xlu0 %52
    %vm55 = vcmp.ge.s32.totalorder %v26, 32
    %vm56 = vcmp.lt.s32.totalorder %v26, 48
    %vm57 = vmand %vm55, %vm56
    %58 = vst.msk [vmem:[#allocation5] sm:$0x1] %vm57, %v53
    %s59 = sld [smem:[#allocation3 + $0x3]]
    %v60 = vstv %s59
    %v61 = vmul.f32 %v60, %v19
    %s62 = sld [smem:[#allocation4 + $0x3]]
    %v63 = vstv %s62
    %v64 = vadd.f32 %v61, %v63
    %66 = vrot.lane.b32.xlu0 %v64, 48
    %v67 = vpop.permute.xlu0 %66
    %vm69 = vcmp.ge.s32.totalorder %v26, 48
    %vm70 = vcmp.lt.s32.totalorder %v26, 64
    %vm71 = vmand %vm69, %vm70
    %72 = vst.msk [vmem:[#allocation5] sm:$0x1] %vm71, %v67
    %v73 = vld [vmem:[%s2] sm:$0x1]
    %s74 = sld [smem:[#allocation3]]
    %v75 = vstv %s74
    %v76 = vmul.f32 %v75, %v73
    %s77 = sld [smem:[#allocation4]]
    %v78 = vstv %s77
    %v79 = vadd.f32 %v76, %v78
    %81 = vrot.lane.b32.xlu0 %v79, 48
    %v82 = vpop.permute.xlu0 %81
    %vm84 = vcmp.ge.s32.totalorder %v26, 64
    %vm85 = vcmp.lt.s32.totalorder %v26, 80
    %vm86 = vmand %vm84, %vm85
    %87 = vst.msk [vmem:[#allocation5] sm:$0x1] %vm86, %v82
    %s88 = sld [smem:[#allocation3 + $0x1]]
    %v89 = vstv %s88
    %v90 = vmul.f32 %v89, %v73
    %s91 = sld [smem:[#allocation4 + $0x1]]
    %v92 = vstv %s91
    %v93 = vadd.f32 %v90, %v92
    %95 = vrot.lane.b32.xlu0 %v93, 64
    %v96 = vpop.permute.xlu0 %95
    %vm98 = vcmp.ge.s32.totalorder %v26, 80
    %vm99 = vcmp.lt.s32.totalorder %v26, 96
    %vm100 = vmand %vm98, %vm99
    %101 = vst.msk [vmem:[#allocation5] sm:$0x1] %vm100, %v96
    %s102 = sld [smem:[#allocation3 + $0x2]]
    %v103 = vstv %s102
    %v104 = vmul.f32 %v103, %v73
    %s105 = sld [smem:[#allocation4 + $0x2]]
    %v106 = vstv %s105
    %v107 = vadd.f32 %v104, %v106
    %109 = vrot.lane.b32.xlu0 %v107, 80
    %v110 = vpop.permute.xlu0 %109
    %vm112 = vcmp.ge.s32.totalorder %v26, 96
    %vm113 = vcmp.lt.s32.totalorder %v26, 112
    %vm114 = vmand %vm112, %vm113
    %115 = vst.msk [vmem:[#allocation5] sm:$0x1] %vm114, %v110
    %s116 = sld [smem:[#allocation3 + $0x3]]
    %v117 = vstv %s116
    %v118 = vmul.f32 %v117, %v73
    %s119 = sld [smem:[#allocation4 + $0x3]]
    %v120 = vstv %s119
    %v121 = vadd.f32 %v118, %v120
    %123 = vrot.lane.b32.xlu0 %v121, 96
    %v124 = vpop.permute.xlu0 %123
    %vm126 = vcmp.ge.s32.totalorder %v26, 112
    %vm127 = vcmp.lt.s32.totalorder %v26, 128
    %vm128 = vmand %vm126, %vm127
    %129 = vst.msk [vmem:[#allocation5] sm:$0x1] %vm128, %v124
    %v130 = vld [vmem:[%s2] sm:$0x1]
    %s131 = sld [smem:[#allocation3]]
    %v132 = vstv %s131
    %v133 = vmul.f32 %v132, %v130
    %s134 = sld [smem:[#allocation4]]
    %v135 = vstv %s134
    %v136 = vadd.f32 %v133, %v135
    %138 = vrot.lane.b32.xlu0 %v136, 96
    %v139 = vpop.permute.xlu0 %138
    %141 = vst.msk [vmem:[#allocation5 + $0x1] sm:$0x1] %vm29, %v139
    %s142 = sld [smem:[#allocation3 + $0x1]]
    %v143 = vstv %s142
    %v144 = vmul.f32 %v143, %v130
    %s145 = sld [smem:[#allocation4 + $0x1]]
    %v146 = vstv %s145
    %v147 = vadd.f32 %v144, %v146
    %149 = vrot.lane.b32.xlu0 %v147, 112
    %v150 = vpop.permute.xlu0 %149
    %152 = vst.msk [vmem:[#allocation5 + $0x1] sm:$0x1] %vm43, %v150
    %s153 = sld [smem:[#allocation3 + $0x2]]
    %v154 = vstv %s153
    %v155 = vmul.f32 %v154, %v130
    %s156 = sld [smem:[#allocation4 + $0x2]]
    %v157 = vstv %s156
    %v158 = vadd.f32 %v155, %v157
    %159 = vst.msk [vmem:[#allocation5 + $0x1] sm:$0x1] %vm57, %v158
    %s160 = sld [smem:[#allocation3 + $0x3]]
    %v161 = vstv %s160
    %v162 = vmul.f32 %v161, %v130
    %s163 = sld [smem:[#allocation4 + $0x3]]
    %v164 = vstv %s163
    %v165 = vadd.f32 %v162, %v164
    %167 = vrot.lane.b32.xlu0 %v165, 16
    %v168 = vpop.permute.xlu0 %167
    %170 = vst.msk [vmem:[#allocation5 + $0x1] sm:$0x1] %vm71, %v168
    %v171 = vld [vmem:[%s2] sm:$0x1]
    %s172 = sld [smem:[#allocation3]]
    %v173 = vstv %s172
    %v174 = vmul.f32 %v173, %v171
    %s175 = sld [smem:[#allocation4]]
    %v176 = vstv %s175
    %v177 = vadd.f32 %v174, %v176
    %179 = vrot.lane.b32.xlu0 %v177, 16
    %v180 = vpop.permute.xlu0 %179
    %182 = vst.msk [vmem:[#allocation5 + $0x1] sm:$0x1] %vm86, %v180
    %s183 = sld [smem:[#allocation3 + $0x1]]
    %v184 = vstv %s183
    %v185 = vmul.f32 %v184, %v171
    %s186 = sld [smem:[#allocation4 + $0x1]]
    %v187 = vstv %s186
    %v188 = vadd.f32 %v185, %v187
    %190 = vrot.lane.b32.xlu0 %v188, 32
    %v191 = vpop.permute.xlu0 %190
    %193 = vst.msk [vmem:[#allocation5 + $0x1] sm:$0x1] %vm100, %v191
    %s194 = sld [smem:[#allocation3 + $0x2]]
    %v195 = vstv %s194
    %v196 = vmul.f32 %v195, %v171
    %s197 = sld [smem:[#allocation4 + $0x2]]
    %v198 = vstv %s197
    %v199 = vadd.f32 %v196, %v198
    %201 = vrot.lane.b32.xlu0 %v199, 48
    %v202 = vpop.permute.xlu0 %201
    %204 = vst.msk [vmem:[#allocation5 + $0x1] sm:$0x1] %vm114, %v202
    %s205 = sld [smem:[#allocation3 + $0x3]]
    %v206 = vstv %s205
    %v207 = vmul.f32 %v206, %v171
    %s208 = sld [smem:[#allocation4 + $0x3]]
    %v209 = vstv %s208
    %v210 = vadd.f32 %v207, %v209
    %212 = vrot.lane.b32.xlu0 %v210, 64
    %v213 = vpop.permute.xlu0 %212
    %215 = vst.msk [vmem:[#allocation5 + $0x1] sm:$0x1] %vm128, %v213
    %v216 = vld [vmem:[%s2] sm:$0x1]
    %s217 = sld [smem:[#allocation3]]
    %v218 = vstv %s217
    %v219 = vmul.f32 %v218, %v216
    %s220 = sld [smem:[#allocation4]]
    %v221 = vstv %s220
    %v222 = vadd.f32 %v219, %v221
    %224 = vrot.lane.b32.xlu0 %v222, 64
    %v225 = vpop.permute.xlu0 %224
    %227 = vst.msk [vmem:[#allocation5 + $0x2] sm:$0x1] %vm29, %v225
    %s228 = sld [smem:[#allocation3 + $0x1]]
    %v229 = vstv %s228
    %v230 = vmul.f32 %v229, %v216
    %s231 = sld [smem:[#allocation4 + $0x1]]
    %v232 = vstv %s231
    %v233 = vadd.f32 %v230, %v232
    %235 = vrot.lane.b32.xlu0 %v233, 80
    %v236 = vpop.permute.xlu0 %235
    %238 = vst.msk [vmem:[#allocation5 + $0x2] sm:$0x1] %vm43, %v236
    %s239 = sld [smem:[#allocation3 + $0x2]]
    %v240 = vstv %s239
    %v241 = vmul.f32 %v240, %v216
    %s242 = sld [smem:[#allocation4 + $0x2]]
    %v243 = vstv %s242
    %v244 = vadd.f32 %v241, %v243
    %246 = vrot.lane.b32.xlu0 %v244, 96
    %v247 = vpop.permute.xlu0 %246
    %249 = vst.msk [vmem:[#allocation5 + $0x2] sm:$0x1] %vm57, %v247
    %s250 = sld [smem:[#allocation3 + $0x3]]
    %v251 = vstv %s250
    %v252 = vmul.f32 %v251, %v216
    %s253 = sld [smem:[#allocation4 + $0x3]]
    %v254 = vstv %s253
    %v255 = vadd.f32 %v252, %v254
    %257 = vrot.lane.b32.xlu0 %v255, 112
    %v258 = vpop.permute.xlu0 %257
    %260 = vst.msk [vmem:[#allocation5 + $0x2] sm:$0x1] %vm71, %v258
    %v261 = vld [vmem:[%s2] sm:$0x1]
    %s262 = sld [smem:[#allocation3]]
    %v263 = vstv %s262
    %v264 = vmul.f32 %v263, %v261
    %s265 = sld [smem:[#allocation4]]
    %v266 = vstv %s265
    %v267 = vadd.f32 %v264, %v266
    %269 = vrot.lane.b32.xlu0 %v267, 112
    %v270 = vpop.permute.xlu0 %269
    %272 = vst.msk [vmem:[#allocation5 + $0x2] sm:$0x1] %vm86, %v270
    %s273 = sld [smem:[#allocation3 + $0x1]]
    %v274 = vstv %s273
    %v275 = vmul.f32 %v274, %v261
    %s276 = sld [smem:[#allocation4 + $0x1]]
    %v277 = vstv %s276
    %v278 = vadd.f32 %v275, %v277
    %279 = vst.msk [vmem:[#allocation5 + $0x2] sm:$0x1] %vm100, %v278
    %s280 = sld [smem:[#allocation3 + $0x2]]
    %v281 = vstv %s280
    %v282 = vmul.f32 %v281, %v261
    %s283 = sld [smem:[#allocation4 + $0x2]]
    %v284 = vstv %s283
    %v285 = vadd.f32 %v282, %v284
    %287 = vrot.lane.b32.xlu0 %v285, 16
    %v288 = vpop.permute.xlu0 %287
    %290 = vst.msk [vmem:[#allocation5 + $0x2] sm:$0x1] %vm114, %v288
    %s291 = sld [smem:[#allocation3 + $0x3]]
    %v292 = vstv %s291
    %v293 = vmul.f32 %v292, %v261
    %s294 = sld [smem:[#allocation4 + $0x3]]
    %v295 = vstv %s294
    %v296 = vadd.f32 %v293, %v295
    %298 = vrot.lane.b32.xlu0 %v296, 32
    %v299 = vpop.permute.xlu0 %298
    %301 = vst.msk [vmem:[#allocation5 + $0x2] sm:$0x1] %vm128, %v299
    %v302 = vld [vmem:[%s2] sm:$0x1]
    %s303 = sld [smem:[#allocation3]]
    %v304 = vstv %s303
    %v305 = vmul.f32 %v304, %v302
    %s306 = sld [smem:[#allocation4]]
    %v307 = vstv %s306
    %v308 = vadd.f32 %v305, %v307
    %310 = vrot.lane.b32.xlu0 %v308, 32
    %v311 = vpop.permute.xlu0 %310
    %313 = vst.msk [vmem:[#allocation5 + $0x3] sm:$0x1] %vm29, %v311
    %s314 = sld [smem:[#allocation3 + $0x1]]
    %v315 = vstv %s314
    %v316 = vmul.f32 %v315, %v302
    %s317 = sld [smem:[#allocation4 + $0x1]]
    %v318 = vstv %s317
    %v319 = vadd.f32 %v316, %v318
    %321 = vrot.lane.b32.xlu0 %v319, 48
    %v322 = vpop.permute.xlu0 %321
    %324 = vst.msk [vmem:[#allocation5 + $0x3] sm:$0x1] %vm43, %v322
    %s325 = sld [smem:[#allocation3 + $0x2]]
    %v326 = vstv %s325
    %v327 = vmul.f32 %v326, %v302
    %s328 = sld [smem:[#allocation4 + $0x2]]
    %v329 = vstv %s328
    %v330 = vadd.f32 %v327, %v329
    %332 = vrot.lane.b32.xlu0 %v330, 64
    %v333 = vpop.permute.xlu0 %332
    %335 = vst.msk [vmem:[#allocation5 + $0x3] sm:$0x1] %vm57, %v333
    %s336 = sld [smem:[#allocation3 + $0x3]]
    %v337 = vstv %s336
    %v338 = vmul.f32 %v337, %v302
    %s339 = sld [smem:[#allocation4 + $0x3]]
    %v340 = vstv %s339
    %v341 = vadd.f32 %v338, %v340
    %343 = vrot.lane.b32.xlu0 %v341, 80
    %v344 = vpop.permute.xlu0 %343
    %346 = vst.msk [vmem:[#allocation5 + $0x3] sm:$0x1] %vm71, %v344
    %v347 = vld [vmem:[%s2] sm:$0x1]
    %s348 = sld [smem:[#allocation3]]
    %v349 = vstv %s348
    %v350 = vmul.f32 %v349, %v347
    %s351 = sld [smem:[#allocation4]]
    %v352 = vstv %s351
    %v353 = vadd.f32 %v350, %v352
    %355 = vrot.lane.b32.xlu0 %v353, 80
    %v356 = vpop.permute.xlu0 %355
    %358 = vst.msk [vmem:[#allocation5 + $0x3] sm:$0x1] %vm86, %v356
    %s359 = sld [smem:[#allocation3 + $0x1]]
    %v360 = vstv %s359
    %v361 = vmul.f32 %v360, %v347
    %s362 = sld [smem:[#allocation4 + $0x1]]
    %v363 = vstv %s362
    %v364 = vadd.f32 %v361, %v363
    %366 = vrot.lane.b32.xlu0 %v364, 96
    %v367 = vpop.permute.xlu0 %366
    %369 = vst.msk [vmem:[#allocation5 + $0x3] sm:$0x1] %vm100, %v367
    %s370 = sld [smem:[#allocation3 + $0x2]]
    %v371 = vstv %s370
    %v372 = vmul.f32 %v371, %v347
    %s373 = sld [smem:[#allocation4 + $0x2]]
    %v374 = vstv %s373
    %v375 = vadd.f32 %v372, %v374
    %377 = vrot.lane.b32.xlu0 %v375, 112
    %v378 = vpop.permute.xlu0 %377
    %380 = vst.msk [vmem:[#allocation5 + $0x3] sm:$0x1] %vm114, %v378
    %s381 = sld [smem:[#allocation3 + $0x3]]
    %v382 = vstv %s381
    %v383 = vmul.f32 %v382, %v347
    %s384 = sld [smem:[#allocation4 + $0x3]]
    %v385 = vstv %s384
    %v386 = vadd.f32 %v383, %v385
    %387 = vst.msk [vmem:[#allocation5 + $0x3] sm:$0x1] %vm128, %v386
    // Predicated region
    $region6: #{tpu_custom_call.1} parent=1 // pred_check
      _
    $region7: #{tpu_custom_call.1} parent=1 // pred_check_branch
      %389 = sbr.rel (0) target = $region9
    $region8: #{tpu_custom_call.1} parent=1 // pred_region
      %s391 = ssub.s32 64, 64
      %392 = vsyncadd [#allocation6], %s391
      %s394 = sshll.u32 [#allocation5], 4
      %s395 = int_to_ptr.vmem [resolvable:$true] %s394
      %397 = dma.vmem_to_hbm [thread:$0]  %s395, 64, %s3, [#allocation6]
    $region9: #{tpu_custom_call.1} parent=1 // pred_fallthru
      _
    // Predicated region
    $region10: #{tpu_custom_call.1} parent=1 // pred_check
      _
    $region11: #{tpu_custom_call.1} parent=1 // pred_check_branch
      %399 = sbr.rel (0) target = $region13
    $region12: #{tpu_custom_call.1} parent=1 // pred_region
      %400 = dma.done [#allocation6], 64
    $region13: #{tpu_custom_call.1} parent=1 // pred_fallthru
      _
    %401 = vsyncpa [#allocation6], 1

</llo_original>
